<compile_context>
chip_gen: v7x
topology: tpu7x:2x2x1
jax: 0.10.0
libtpu: 0.0.40
codegen_flags: <defaults>
</compile_context>

<pallas_src>
import math

import jax
import jax.numpy as jnp
from jax.experimental import pallas as pl
from jax.experimental.pallas import tpu as pltpu


_HEAD_PAD = 128       # lane-dense fused head output width
_TILE_M_MAX = 512     # row tile; sized to stay far under VMEM on v5e/v6e/v7x


def _round_up(v, m):
    return ((v + m - 1) // m) * m


def _mlp_kernel(x_ref, w_fc_ref, b_fc_ref, w_heads_ref, out_ref):
    # fc + bias + ReLU, then one fused head matmul (lane-dense output).
    h = jnp.dot(x_ref[...], w_fc_ref[...], preferred_element_type=jnp.float32)
    h = jnp.maximum(h + b_fc_ref[...], 0.0)            # (TILE_M, H) + (1, H)
    out_ref[...] = jnp.dot(h, w_heads_ref[...],
                           preferred_element_type=jnp.float32)


def mlp_forward(x, w_fc_t, b_fc, w_land_t, w_shot_t, w_move_t):
    """x: (B, S, F) float-like. Weights are pre-transposed (in, out).

    Returns (land_logit, shot_logit, move_logit) matching the PyTorch module.
    """
    x = x.astype(jnp.float32)                 # mirrors `x = x.float()`
    B, S, F = x.shape
    H = w_fc_t.shape[1]
    shot_len = w_shot_t.shape[1]
    n_heads = 2 + shot_len + 2
    assert n_heads <= _HEAD_PAD

    M = B * S
    x2d = x.reshape(M, F)
    b_fc_2d = b_fc.reshape(1, H).astype(jnp.float32)

    # Fuse + lane-pad the head weights: (H, 2+shot_len+2) -> (H, 128).
    w_heads = jnp.concatenate(
        [w_land_t, w_shot_t, w_move_t], axis=1).astype(jnp.float32)
    w_heads = jnp.pad(w_heads, ((0, 0), (0, _HEAD_PAD - n_heads)))

    # Row tiling. Keep sublane-aligned (multiple of 8); pad M if needed.
    tile_m = min(_TILE_M_MAX, _round_up(M, 8))
    m_pad = _round_up(M, tile_m)
    if m_pad != M:
        x2d = jnp.pad(x2d, ((0, m_pad - M), (0, 0)))
    grid = (m_pad // tile_m,)

    cost = pl.CostEstimate(
        flops=2 * m_pad * F * H + 2 * m_pad * H * _HEAD_PAD,
        bytes_accessed=4 * (m_pad * F + F * H + H + H * _HEAD_PAD
                            + m_pad * _HEAD_PAD),
        transcendentals=0,
    )

    out = pl.pallas_call(
        _mlp_kernel,
        out_shape=jax.ShapeDtypeStruct((m_pad, _HEAD_PAD), jnp.float32),
        grid=grid,
        in_specs=[
            pl.BlockSpec((tile_m, F), lambda i: (i, 0)),          # x rows
            pl.BlockSpec((F, H), lambda i: (0, 0)),               # W_fc^T
            pl.BlockSpec((1, H), lambda i: (0, 0)),               # b_fc
            pl.BlockSpec((H, _HEAD_PAD), lambda i: (0, 0)),       # fused heads
        ],
        out_specs=pl.BlockSpec((tile_m, _HEAD_PAD), lambda i: (i, 0)),
        compiler_params=pltpu.CompilerParams(
            dimension_semantics=("parallel",)),
        cost_estimate=cost,
    )(x2d, w_fc_t.astype(jnp.float32), b_fc_2d, w_heads)

    # Cheap XLA slices back to the three logits; drop padded rows/columns.
    out = out[:M]
    land = out[:, 0:2].reshape(B, S, 2)
    shot = out[:, 2:2 + shot_len].reshape(B, S, shot_len)
    move = out[:, 2 + shot_len:2 + shot_len + 2].reshape(B, S, 2)
    return land, shot, move


def _ref_forward(x, w_fc_t, b_fc, w_land_t, w_shot_t, w_move_t):
    h = jnp.maximum(x.astype(jnp.float32) @ w_fc_t + b_fc, 0.0)
    return h @ w_land_t, h @ w_shot_t, h @ w_move_t


if __name__ == "__main__":
    # Small shapes consistent with the module: nn.Linear(input_size, hidden).
    input_size = 16
    hidden_size = 32
    shot_type_len = 10
    player_id_len = 6   # unused in forward(); no embeddings on the hot path
    B, S = 2, 8

    key = jax.random.PRNGKey(0)
    kx, k1, k2, k3, k4, k5 = jax.random.split(key, 6)

    x = jax.random.normal(kx, (B, S, input_size), dtype=jnp.float32)

    # Parameters stored pre-transposed as (in, out) = PyTorch weight.T.
    w_fc_t = jax.random.normal(k1, (input_size, hidden_size), jnp.float32) * 0.1
    b_fc = jax.random.normal(k2, (hidden_size,), jnp.float32) * 0.1
    w_land_t = jax.random.normal(k3, (hidden_size, 2), jnp.float32) * 0.1
    w_shot_t = jax.random.normal(k4, (hidden_size, shot_type_len), jnp.float32) * 0.1
    w_move_t = jax.random.normal(k5, (hidden_size, 2), jnp.float32) * 0.1

    land, shot, move = mlp_forward(x, w_fc_t, b_fc, w_land_t, w_shot_t, w_move_t)
    jax.block_until_ready((land, shot, move))

    # Check against a plain-JAX reference.
    rl, rs, rm = _ref_forward(x, w_fc_t, b_fc, w_land_t, w_shot_t, w_move_t)
    assert land.shape == (B, S, 2)
    assert shot.shape == (B, S, shot_type_len)
    assert move.shape == (B, S, 2)
    assert jnp.allclose(land, rl, atol=1e-5)
    assert jnp.allclose(shot, rs, atol=1e-5)
    assert jnp.allclose(move, rm, atol=1e-5)

    print("KERNEL_OK")
</pallas_src>

<mosaic_0001>
module attributes {stable_mosaic.version = 11 : i64} {
  func.func @_mlp_kernel(%arg0: i32, %arg1: memref<16x16xf32, #tpu.memory_space<vmem>>, %arg2: memref<16x32xf32, #tpu.memory_space<vmem>>, %arg3: memref<1x32xf32, #tpu.memory_space<vmem>>, %arg4: memref<32x128xf32, #tpu.memory_space<vmem>>, %arg5: memref<16x128xf32, #tpu.memory_space<vmem>>) attributes {dimension_semantics = [#tpu.dimension_semantics<parallel>], iteration_bounds = array<i64: 1>, scalar_prefetch = 0 : i64, scratch_operands = 0 : i64, tpu.core_type = #tpu.core_type<tc>, window_params = [{transform_indices = @transform_0, window_bounds = array<i64: 16, 16>}, {pipeline_mode = #tpu.pipeline_mode<synchronous>, transform_indices = @transform_1, window_bounds = array<i64: 16, 32>}, {pipeline_mode = #tpu.pipeline_mode<synchronous>, transform_indices = @transform_2, window_bounds = array<i64: 1, 32>}, {pipeline_mode = #tpu.pipeline_mode<synchronous>, transform_indices = @transform_3, window_bounds = array<i64: 32, 128>}, {transform_indices = @transform_4, window_bounds = array<i64: 16, 128>}]} {
    %c0 = arith.constant 0 : index
    %c0_0 = arith.constant 0 : index
    %0 = vector.load %arg1[%c0, %c0_0] : memref<16x16xf32, #tpu.memory_space<vmem>>, vector<16x16xf32>
    %c0_1 = arith.constant 0 : index
    %c0_2 = arith.constant 0 : index
    %1 = vector.load %arg2[%c0_1, %c0_2] : memref<16x32xf32, #tpu.memory_space<vmem>>, vector<16x32xf32>
    %cst = arith.constant dense<0.000000e+00> : vector<16x32xf32>
    %2 = tpu.matmul %0, %1, %cst {dimension_numbers = #tpu.dot_dimension_numbers<[1], [0], [0], [1], [0, 0, 1, 1], [], []>} : vector<16x16xf32>, vector<16x32xf32>, vector<16x32xf32> -> vector<16x32xf32>
    %c0_3 = arith.constant 0 : index
    %c0_4 = arith.constant 0 : index
    %3 = vector.load %arg3[%c0_3, %c0_4] : memref<1x32xf32, #tpu.memory_space<vmem>>, vector<1x32xf32>
    %4 = vector.broadcast %3 : vector<1x32xf32> to vector<16x32xf32>
    %5 = arith.addf %2, %4 : vector<16x32xf32>
    %cst_5 = arith.constant 0.000000e+00 : f32
    %6 = vector.broadcast %cst_5 : f32 to vector<16x32xf32>
    %7 = arith.maximumf %5, %6 : vector<16x32xf32>
    %c0_6 = arith.constant 0 : index
    %c0_7 = arith.constant 0 : index
    %8 = vector.load %arg4[%c0_6, %c0_7] : memref<32x128xf32, #tpu.memory_space<vmem>>, vector<32x128xf32>
    %cst_8 = arith.constant dense<0.000000e+00> : vector<16x128xf32>
    %9 = tpu.matmul %7, %8, %cst_8 {dimension_numbers = #tpu.dot_dimension_numbers<[1], [0], [0], [1], [0, 0, 1, 1], [], []>} : vector<16x32xf32>, vector<32x128xf32>, vector<16x128xf32> -> vector<16x128xf32>
    %c0_9 = arith.constant 0 : index
    %c0_10 = arith.constant 0 : index
    %10 = vector.load %arg5[%c0_9, %c0_10] : memref<16x128xf32, #tpu.memory_space<vmem>>, vector<16x128xf32>
    tpu.vector_store %arg5[%c0_9, %c0_10], %9 {strides = array<i32>} : memref<16x128xf32, #tpu.memory_space<vmem>>, vector<16x128xf32>,
    return
  }
  func.func @transform_0(%arg0: i32) -> (i32, i32) {
    %c0_i32 = arith.constant 0 : i32
    %c0_i32_0 = arith.constant 0 : i32
    return %arg0, %c0_i32 : i32, i32
  }
  func.func @transform_1(%arg0: i32) -> (i32, i32) {
    %c0_i32 = arith.constant 0 : i32
    %c0_i32_0 = arith.constant 0 : i32
    %c0_i32_1 = arith.constant 0 : i32
    return %c0_i32, %c0_i32_0 : i32, i32
  }
  func.func @transform_2(%arg0: i32) -> (i32, i32) {
    %c0_i32 = arith.constant 0 : i32
    %c0_i32_0 = arith.constant 0 : i32
    %c0_i32_1 = arith.constant 0 : i32
    return %c0_i32, %c0_i32_0 : i32, i32
  }
  func.func @transform_3(%arg0: i32) -> (i32, i32) {
    %c0_i32 = arith.constant 0 : i32
    %c0_i32_0 = arith.constant 0 : i32
    %c0_i32_1 = arith.constant 0 : i32
    return %c0_i32, %c0_i32_0 : i32, i32
  }
  func.func @transform_4(%arg0: i32) -> (i32, i32) {
    %c0_i32 = arith.constant 0 : i32
    %c0_i32_0 = arith.constant 0 : i32
    return %arg0, %c0_i32 : i32, i32
  }
}

</mosaic_0001>

<llo_original>
// kernel: tpu_custom_call.1
$region0: #{tpu_custom_call.1}
  #allocation0 [shape = 'u32[]', space=smem, size = 0x4, offset = 0x4, fixed_abs, tag = 'smem constant byte address 0x4 - core index']
  #allocation1 [shape = 'u32[144,128]{1,0:T(1,128)}', space=vmem, size = 0x12000, scoped, tag = 'internal scratch']
  %s0 = inlined_call_operand.hbm [shape: f32[16,16], index: 0, kind: input, shape index: {}]
  %s1 = inlined_call_operand.hbm [shape: f32[16,32], index: 1, kind: input, shape index: {}]
  %s2 = inlined_call_operand.vmem [shape: f32[1,32], index: 2, kind: input, shape index: {}]
  %s3 = inlined_call_operand.hbm [shape: f32[32,128], index: 3, kind: input, shape index: {}]
  %s4 = inlined_call_operand.hbm [shape: f32[16,128], index: 4, kind: output, shape index: {}]
  %s5 = sld [smem:[#allocation0]]
  $region38: #{tpu_custom_call.1} parent=0
    _
  %s7 = ssub.s32 1, %s5
  %s8 = scalar_select 0, %s7, %s5
  $region1: #{tpu_custom_call.1} parent=0
    #allocation2 [shape = 'u8[8192]{0}', space=vmem, size = 0x2000, scoped, tag = 'input window, operand 0, single buffered']
    #allocation3 [shape = 's32[1]{0}', space=sflag, size = 0x4, scoped, tag = 'scoped memory for tpu_custom_call.1']
    #allocation4 [shape = 's32[1]{0}', space=sflag, size = 0x4, scoped, tag = 'scoped memory for tpu_custom_call.1']
    #allocation5 [shape = 'u8[8192]{0}', space=vmem, size = 0x2000, scoped, tag = 'input window, operand 1, single buffered']
    #allocation6 [shape = 's32[1]{0}', space=sflag, size = 0x4, scoped, tag = 'scoped memory for tpu_custom_call.1']
    #allocation7 [shape = 'u8[16384]{0}', space=vmem, size = 0x4000, scoped, tag = 'input window, operand 3, single buffered']
    #allocation8 [shape = 'u8[8192]{0}', space=vmem, size = 0x2000, scoped, tag = 'output window, operand 0, single buffered']
    %9 = vsyncpa [#allocation3], 0
    %10 = vsyncpa [#allocation6], 0
    %11 = vsyncpa [#allocation4], 0
    // Predicated region
    $region2: #{tpu_custom_call.1} parent=1 // pred_check
      _
    $region3: #{tpu_custom_call.1} parent=1 // pred_check_branch
      %13 = sbr.rel (0) target = $region5
    $region4: #{tpu_custom_call.1} parent=1 // pred_region
      %s15 = ssub.s32 256, 256
      %16 = vsyncadd [#allocation3], %s15
      %s17 = sshll.u32 [#allocation2], 4
      %s18 = int_to_ptr.vmem [resolvable:$true] %s17
      %23 = dma.hbm_to_vmem [thread:$0]  %s0, 256, %s18, [#allocation3], 128, 128, 8
    $region5: #{tpu_custom_call.1} parent=1 // pred_fallthru
      _
    // Predicated region
    $region6: #{tpu_custom_call.1} parent=1 // pred_check
      _
    $region7: #{tpu_custom_call.1} parent=1 // pred_check_branch
      %25 = sbr.rel (0) target = $region9
    $region8: #{tpu_custom_call.1} parent=1 // pred_region
      %s27 = ssub.s32 256, 256
      %28 = vsyncadd [#allocation6], %s27
      %s29 = sshll.u32 [#allocation5], 4
      %s30 = int_to_ptr.vmem [resolvable:$true] %s29
      %35 = dma.hbm_to_vmem [thread:$0]  %s1, 256, %s30, [#allocation6], 128, 128, 8
    $region9: #{tpu_custom_call.1} parent=1 // pred_fallthru
      _
    // Predicated region
    $region10: #{tpu_custom_call.1} parent=1 // pred_check
      _
    $region11: #{tpu_custom_call.1} parent=1 // pred_check_branch
      %37 = sbr.rel (0) target = $region13
    $region12: #{tpu_custom_call.1} parent=1 // pred_region
      _
    $region13: #{tpu_custom_call.1} parent=1 // pred_fallthru
      _
    // Predicated region
    $region14: #{tpu_custom_call.1} parent=1 // pred_check
      _
    $region15: #{tpu_custom_call.1} parent=1 // pred_check_branch
      %39 = sbr.rel (0) target = $region17
    $region16: #{tpu_custom_call.1} parent=1 // pred_region
      %s41 = ssub.s32 512, 512
      %42 = vsyncadd [#allocation6], %s41
      %s43 = sshll.u32 [#allocation7], 4
      %s44 = int_to_ptr.vmem [resolvable:$true] %s43
      %49 = dma.hbm_to_vmem [thread:$0]  %s3, 512, %s44, [#allocation6], 128, 128, 8
    $region17: #{tpu_custom_call.1} parent=1 // pred_fallthru
      _
    // Predicated region
    $region18: #{tpu_custom_call.1} parent=1 // pred_check
      _
    $region19: #{tpu_custom_call.1} parent=1 // pred_check_branch
      %51 = sbr.rel (0) target = $region21
    $region20: #{tpu_custom_call.1} parent=1 // pred_region
      %52 = dma.done [#allocation3], 256
    $region21: #{tpu_custom_call.1} parent=1 // pred_fallthru
      _
    // Predicated region
    $region22: #{tpu_custom_call.1} parent=1 // pred_check
      _
    $region23: #{tpu_custom_call.1} parent=1 // pred_check_branch
      %54 = sbr.rel (0) target = $region25
    $region24: #{tpu_custom_call.1} parent=1 // pred_region
      %55 = dma.done [#allocation6], 256
    $region25: #{tpu_custom_call.1} parent=1 // pred_fallthru
      _
    // Predicated region
    $region26: #{tpu_custom_call.1} parent=1 // pred_check
      _
    $region27: #{tpu_custom_call.1} parent=1 // pred_check_branch
      %57 = sbr.rel (0) target = $region29
    $region28: #{tpu_custom_call.1} parent=1 // pred_region
      %58 = dma.done [#allocation6], 512
    $region29: #{tpu_custom_call.1} parent=1 // pred_fallthru
      _
    %v59 = vld [vmem:[#allocation2] sm:$0xff]
    %v60 = vld [vmem:[#allocation2 + $0x8] sm:$0xff]
    %v61 = vld [vmem:[#allocation5] sm:$0xff]
    %v62 = vld [vmem:[#allocation5 + $0x8] sm:$0xff]
    %v63 = vld [vmem:[%s2] sm:$0x1]
    %v65 = vlaneseq
    %v66 = vshrl.u32 %v65, 7
    %v67 = vsub.s32 0, %v66
    %v68 = vrot.slane %v63, %v67
    %vm70 = vcmask 130048
    %v72 = vsel %vm70, %v59, 0
    %v75 = vsel %vm70, %v60, 0
    %77 = vmatprep.subr.mxu0 0.0
    %78 = vmatpush1.msra.mxu0 %v61
    %79 = vmatprep.subr.mxu0 0.0
    %80 = vmatpush1.msra.mxu0 %v62
    %81 = vmatprep.subr.mxu0 0.0
    %82 = vmatpush1.msra.mxu0 0.0
    %83 = vmatprep.subr.mxu0 0.0
    %84 = vmatpush1.msra.mxu0 0.0
    %85 = vmatprep.subr.mxu0 0.0
    %86 = vmatpush1.msra.mxu0 0.0
    %87 = vmatprep.subr.mxu0 0.0
    %88 = vmatpush1.msra.mxu0 0.0
    %89 = vmatprep.subr.mxu0 0.0
    %90 = vmatpush1.msra.mxu0 0.0
    %91 = vmatprep.subr.mxu0 0.0
    %92 = vmatpush1.msra.mxu0 0.0
    %93 = vmatprep.subr.mxu0 0.0
    %94 = vmatpush1.msra.mxu0 0.0
    %95 = vmatprep.subr.mxu0 0.0
    %96 = vmatpush1.msra.mxu0 0.0
    %97 = vmatprep.subr.mxu0 0.0
    %98 = vmatpush1.msra.mxu0 0.0
    %99 = vmatprep.subr.mxu0 0.0
    %100 = vmatpush1.msra.mxu0 0.0
    %101 = vmatprep.subr.mxu0 0.0
    %102 = vmatpush1.msra.mxu0 0.0
    %103 = vmatprep.subr.mxu0 0.0
    %104 = vmatpush1.msra.mxu0 0.0
    %105 = vmatprep.subr.mxu0 0.0
    %106 = vmatpush1.msra.mxu0 0.0
    %107 = vmatprep.subr.mxu0 0.0
    %108 = vmatpush1.msra.mxu0 0.0
    %109 = vmatprep.subr.mxu0 0.0
    %110 = vmatpush1.msra.mxu0 0.0
    %111 = vmatprep.subr.mxu0 0.0
    %112 = vmatpush1.msra.mxu0 0.0
    %113 = vmatprep.subr.mxu0 0.0
    %114 = vmatpush1.msra.mxu0 0.0
    %115 = vmatprep.subr.mxu0 0.0
    %116 = vmatpush1.msra.mxu0 0.0
    %117 = vmatprep.subr.mxu0 0.0
    %118 = vmatpush1.msra.mxu0 0.0
    %119 = vmatprep.subr.mxu0 0.0
    %120 = vmatpush1.msra.mxu0 0.0
    %121 = vmatprep.subr.mxu0 0.0
    %122 = vmatpush1.msra.mxu0 0.0
    %123 = vmatprep.subr.mxu0 0.0
    %124 = vmatpush1.msra.mxu0 0.0
    %125 = vmatprep.subr.mxu0 0.0
    %126 = vmatpush1.msra.mxu0 0.0
    %127 = vmatprep.subr.mxu0 0.0
    %128 = vmatpush1.msra.mxu0 0.0
    %129 = vmatprep.subr.mxu0 0.0
    %130 = vmatpush1.msra.mxu0 0.0
    %131 = vmatprep.subr.mxu0 0.0
    %132 = vmatpush1.msra.mxu0 0.0
    %133 = vmatprep.subr.mxu0 0.0
    %134 = vmatpush1.msra.mxu0 0.0
    %135 = vmatprep.subr.mxu0 0.0
    %136 = vmatpush1.msra.mxu0 0.0
    %137 = vmatprep.subr.mxu0 0.0
    %138 = vmatpush1.msra.mxu0 0.0
    %139 = vmatprep.subr.mxu0 0.0
    %140 = vmatpush1.msra.mxu0 0.0
    %141 = vmatprep.mubr.f32.mxu0 0.0
    %142 = vmatmul.mubr.f32.gmra.mrb[0].mxu0 %v72
    %v143 = vpop.f32.mrb[0].mxu0
    %v144 = vadd.f32 %v68, %v143
    %v145 = vpop.f32.mrb[0].mxu0
    %146 = vmatprep.mubr.f32.mxu0 0.0
    %147 = vmatmul.mubr.f32.gmra.mrb[0].mxu0 %v75
    %v148 = vpop.f32.mrb[0].mxu0
    %v149 = vadd.f32 %v68, %v148
    %v150 = vpop.f32.mrb[0].mxu0
    %151 = vdwg.mxu0
    %v152 = vmax.f32 %v144, 0.0
    %v153 = vmax.f32 %v149, 0.0
    %v154 = vld [vmem:[#allocation7] sm:$0xff]
    %v155 = vld [vmem:[#allocation7 + $0x8] sm:$0xff]
    %v156 = vld [vmem:[#allocation7 + $0x10] sm:$0xff]
    %v157 = vld [vmem:[#allocation7 + $0x18] sm:$0xff]
    %vm158 = vcmask 261120
    %v160 = vsel %vm158, %v152, 0
    %v163 = vsel %vm158, %v153, 0
    %165 = vmatprep.subr.mxu0 0.0
    %166 = vmatpush1.msra.mxu0 %v154
    %167 = vmatprep.subr.mxu0 0.0
    %168 = vmatpush1.msra.mxu0 %v155
    %169 = vmatprep.subr.mxu0 0.0
    %170 = vmatpush1.msra.mxu0 %v156
    %171 = vmatprep.subr.mxu0 0.0
    %172 = vmatpush1.msra.mxu0 %v157
    %173 = vmatprep.subr.mxu0 0.0
    %174 = vmatpush1.msra.mxu0 0.0
    %175 = vmatprep.subr.mxu0 0.0
    %176 = vmatpush1.msra.mxu0 0.0
    %177 = vmatprep.subr.mxu0 0.0
    %178 = vmatpush1.msra.mxu0 0.0
    %179 = vmatprep.subr.mxu0 0.0
    %180 = vmatpush1.msra.mxu0 0.0
    %181 = vmatprep.subr.mxu0 0.0
    %182 = vmatpush1.msra.mxu0 0.0
    %183 = vmatprep.subr.mxu0 0.0
    %184 = vmatpush1.msra.mxu0 0.0
    %185 = vmatprep.subr.mxu0 0.0
    %186 = vmatpush1.msra.mxu0 0.0
    %187 = vmatprep.subr.mxu0 0.0
    %188 = vmatpush1.msra.mxu0 0.0
    %189 = vmatprep.subr.mxu0 0.0
    %190 = vmatpush1.msra.mxu0 0.0
    %191 = vmatprep.subr.mxu0 0.0
    %192 = vmatpush1.msra.mxu0 0.0
    %193 = vmatprep.subr.mxu0 0.0
    %194 = vmatpush1.msra.mxu0 0.0
    %195 = vmatprep.subr.mxu0 0.0
    %196 = vmatpush1.msra.mxu0 0.0
    %197 = vmatprep.subr.mxu0 0.0
    %198 = vmatpush1.msra.mxu0 0.0
    %199 = vmatprep.subr.mxu0 0.0
    %200 = vmatpush1.msra.mxu0 0.0
    %201 = vmatprep.subr.mxu0 0.0
    %202 = vmatpush1.msra.mxu0 0.0
    %203 = vmatprep.subr.mxu0 0.0
    %204 = vmatpush1.msra.mxu0 0.0
    %205 = vmatprep.subr.mxu0 0.0
    %206 = vmatpush1.msra.mxu0 0.0
    %207 = vmatprep.subr.mxu0 0.0
    %208 = vmatpush1.msra.mxu0 0.0
    %209 = vmatprep.subr.mxu0 0.0
    %210 = vmatpush1.msra.mxu0 0.0
    %211 = vmatprep.subr.mxu0 0.0
    %212 = vmatpush1.msra.mxu0 0.0
    %213 = vmatprep.subr.mxu0 0.0
    %214 = vmatpush1.msra.mxu0 0.0
    %215 = vmatprep.subr.mxu0 0.0
    %216 = vmatpush1.msra.mxu0 0.0
    %217 = vmatprep.subr.mxu0 0.0
    %218 = vmatpush1.msra.mxu0 0.0
    %219 = vmatprep.subr.mxu0 0.0
    %220 = vmatpush1.msra.mxu0 0.0
    %221 = vmatprep.subr.mxu0 0.0
    %222 = vmatpush1.msra.mxu0 0.0
    %223 = vmatprep.subr.mxu0 0.0
    %224 = vmatpush1.msra.mxu0 0.0
    %225 = vmatprep.subr.mxu0 0.0
    %226 = vmatpush1.msra.mxu0 0.0
    %227 = vmatprep.subr.mxu0 0.0
    %228 = vmatpush1.msra.mxu0 0.0
    %229 = vmatprep.mubr.f32.mxu0 0.0
    %230 = vmatmul.mubr.f32.gmra.mrb[0].mxu0 %v160
    %v231 = vpop.f32.mrb[0].mxu0
    %v232 = vadd.f32 0.0, %v231
    %v233 = vpop.f32.mrb[0].mxu0
    %234 = vmatprep.mubr.f32.mxu0 0.0
    %235 = vmatmul.mubr.f32.gmra.mrb[0].mxu0 %v163
    %v236 = vpop.f32.mrb[0].mxu0
    %v237 = vadd.f32 0.0, %v236
    %v238 = vpop.f32.mrb[0].mxu0
    %239 = vdwg.mxu0
    %240 = vst [vmem:[#allocation8] sm:$0xff] %v232
    %241 = vst [vmem:[#allocation8 + $0x8] sm:$0xff] %v237
    // Predicated region
    $region30: #{tpu_custom_call.1} parent=1 // pred_check
      _
    $region31: #{tpu_custom_call.1} parent=1 // pred_check_branch
      %243 = sbr.rel (0) target = $region33
    $region32: #{tpu_custom_call.1} parent=1 // pred_region
      %s245 = ssub.s32 256, 256
      %246 = vsyncadd [#allocation4], %s245
      %s247 = sshll.u32 [#allocation8], 4
      %s248 = int_to_ptr.vmem [resolvable:$true] %s247
      %253 = dma.vmem_to_hbm [thread:$0]  %s248, 256, %s4, [#allocation4], 128, 128, 8
    $region33: #{tpu_custom_call.1} parent=1 // pred_fallthru
      _
    // Predicated region
    $region34: #{tpu_custom_call.1} parent=1 // pred_check
      _
    $region35: #{tpu_custom_call.1} parent=1 // pred_check_branch
      %255 = sbr.rel (0) target = $region37
    $region36: #{tpu_custom_call.1} parent=1 // pred_region
      %256 = dma.done [#allocation4], 256
    $region37: #{tpu_custom_call.1} parent=1 // pred_fallthru
      _
    %257 = vsyncpa [#allocation3], 1
    %258 = vsyncpa [#allocation6], 1
    %259 = vsyncpa [#allocation4], 1

</llo_original>
